<compile_context>
chip_gen: v5e
topology: v5e:2x2
jax: 0.10.0
libtpu: 0.0.40
codegen_flags: <defaults>
</compile_context>

<pallas_src>
import jax
import jax.numpy as jnp
from jax.experimental import pallas as pl
from jax.experimental.pallas import tpu as pltpu

INPUT_SIZE = 99
HIDDEN = 64
NUM_CLASSES = 3
DEFAULT_BLOCK_ROWS = 512  # per-step batch tile (few-hundred-KiB VMEM buffer)


def _mlp_kernel(x_ref, w1_ref, b1_ref, w2_ref, b2_ref, o_ref):
    # fc1: (TB, 99)bf16 @ (99, 64)bf16 -> f32 accumulate on the MXU
    h = jnp.dot(x_ref[...], w1_ref[...], preferred_element_type=jnp.float32)
    # bias + ReLU in f32 on the VPU (v5e VPU has no bf16)
    h = jnp.maximum(h + b1_ref[...], 0.0)
    # dropout: identity (inference mode)
    # fc2: (TB, 64)bf16 @ (64, 3)bf16 -> f32 accumulate
    out = jnp.dot(h.astype(w2_ref.dtype), w2_ref[...],
                  preferred_element_type=jnp.float32)
    o_ref[...] = (out + b2_ref[...]).astype(o_ref.dtype)


def fitness_model_forward(x, w1, b1, w2, b2, *, block_rows=DEFAULT_BLOCK_ROWS):
    """x: (B, 99); w1: (99, 64); b1: (1, 64); w2: (64, 3); b2: (1, 3).

    Weights are stored pre-transposed as (in_features, out_features), so the
    kernel computes plain `x @ W + b`. Output is f32 of shape (B, 3).
    """
    B, F = x.shape
    assert F == INPUT_SIZE

    # Tile the batch; if B fits in one tile, use the full array as the block
    # (always legal w.r.t. the (8,128) rule since it equals the array dims).
    tb = block_rows if B > block_rows else B
    grid = (pl.cdiv(B, tb),)

    # bf16 for the MXU operands; f32 biases / accumulation / output.
    xb = x.astype(jnp.bfloat16)
    w1b = w1.astype(jnp.bfloat16)
    w2b = w2.astype(jnp.bfloat16)
    b1f = b1.astype(jnp.float32)
    b2f = b2.astype(jnp.float32)

    flops = 2 * B * (INPUT_SIZE * HIDDEN + HIDDEN * NUM_CLASSES)
    bytes_accessed = (
        B * (INPUT_SIZE * 2 + NUM_CLASSES * 4)          # x read (bf16) + out write (f32)
        + (INPUT_SIZE * HIDDEN + HIDDEN * NUM_CLASSES) * 2  # weights (bf16)
        + (HIDDEN + NUM_CLASSES) * 4                    # biases (f32)
    )

    return pl.pallas_call(
        _mlp_kernel,
        out_shape=jax.ShapeDtypeStruct((B, NUM_CLASSES), jnp.float32),
        grid=grid,
        in_specs=[
            # batch-tiled input
            pl.BlockSpec((tb, INPUT_SIZE), lambda i: (i, 0)),
            # VMEM-resident weights/biases (constant block index across grid)
            pl.BlockSpec((INPUT_SIZE, HIDDEN), lambda i: (0, 0)),
            pl.BlockSpec((1, HIDDEN), lambda i: (0, 0)),
            pl.BlockSpec((HIDDEN, NUM_CLASSES), lambda i: (0, 0)),
            pl.BlockSpec((1, NUM_CLASSES), lambda i: (0, 0)),
        ],
        out_specs=pl.BlockSpec((tb, NUM_CLASSES), lambda i: (i, 0)),
        compiler_params=pltpu.CompilerParams(
            dimension_semantics=("parallel",)),
        cost_estimate=pl.CostEstimate(
            flops=flops, transcendentals=0, bytes_accessed=bytes_accessed),
    )(xb, w1b, b1f, w2b, b2f)


def init_params(key):
    """Deterministic init mimicking PyTorch nn.Linear default (uniform +-1/sqrt(fan_in))."""
    k1, k2, k3, k4 = jax.random.split(key, 4)
    bound1 = 1.0 / jnp.sqrt(jnp.float32(INPUT_SIZE))
    bound2 = 1.0 / jnp.sqrt(jnp.float32(HIDDEN))
    # Stored as (in, out) = transpose of PyTorch's (out, in) weight layout.
    w1 = jax.random.uniform(k1, (INPUT_SIZE, HIDDEN), jnp.float32, -bound1, bound1)
    b1 = jax.random.uniform(k2, (1, HIDDEN), jnp.float32, -bound1, bound1)
    w2 = jax.random.uniform(k3, (HIDDEN, NUM_CLASSES), jnp.float32, -bound2, bound2)
    b2 = jax.random.uniform(k4, (1, NUM_CLASSES), jnp.float32, -bound2, bound2)
    return w1, b1, w2, b2


def reference_forward(x, w1, b1, w2, b2):
    """Pure-JAX reference mirroring the kernel's bf16-operand / f32-accumulate math."""
    xb = x.astype(jnp.bfloat16)
    w1b = w1.astype(jnp.bfloat16)
    w2b = w2.astype(jnp.bfloat16)
    h = jnp.dot(xb, w1b, preferred_element_type=jnp.float32) + b1
    h = jnp.maximum(h, 0.0)
    return jnp.dot(h.astype(jnp.bfloat16), w2b,
                   preferred_element_type=jnp.float32) + b2


if __name__ == "__main__":
    key = jax.random.PRNGKey(0)
    kx, kp = jax.random.split(key)
    w1, b1, w2, b2 = init_params(kp)

    # Case 1: batch larger than one tile and not a multiple of it
    # (exercises the grid, weight residency, and the partial final block).
    B1 = 1037
    x1 = jax.random.normal(kx, (B1, INPUT_SIZE), jnp.float32)
    out1 = jax.block_until_ready(fitness_model_forward(x1, w1, b1, w2, b2))
    ref1 = reference_forward(x1, w1, b1, w2, b2)
    assert out1.shape == (B1, NUM_CLASSES)
    assert jnp.allclose(out1, ref1, atol=1e-2, rtol=1e-2)

    # Case 2: tiny batch (single full-array block).
    B2 = 8
    x2 = jax.random.normal(jax.random.PRNGKey(1), (B2, INPUT_SIZE), jnp.float32)
    out2 = jax.block_until_ready(fitness_model_forward(x2, w1, b1, w2, b2))
    ref2 = reference_forward(x2, w1, b1, w2, b2)
    assert out2.shape == (B2, NUM_CLASSES)
    assert jnp.allclose(out2, ref2, atol=1e-2, rtol=1e-2)

    print("KERNEL_OK")
</pallas_src>

<mosaic_0001>
module attributes {stable_mosaic.version = 11 : i64} {
  func.func @_mlp_kernel(%arg0: i32, %arg1: memref<512x99xbf16, #tpu.memory_space<vmem>>, %arg2: memref<99x64xbf16, #tpu.memory_space<vmem>>, %arg3: memref<1x64xf32, #tpu.memory_space<vmem>>, %arg4: memref<64x3xbf16, #tpu.memory_space<vmem>>, %arg5: memref<1x3xf32, #tpu.memory_space<vmem>>, %arg6: memref<512x3xf32, #tpu.memory_space<vmem>>) attributes {dimension_semantics = [#tpu.dimension_semantics<parallel>], iteration_bounds = array<i64: 3>, scalar_prefetch = 0 : i64, scratch_operands = 0 : i64, tpu.core_type = #tpu.core_type<tc>, window_params = [{transform_indices = @transform_0, window_bounds = array<i64: 512, 99>}, {pipeline_mode = #tpu.pipeline_mode<synchronous>, transform_indices = @transform_1, window_bounds = array<i64: 99, 64>}, {pipeline_mode = #tpu.pipeline_mode<synchronous>, transform_indices = @transform_2, window_bounds = array<i64: 1, 64>}, {pipeline_mode = #tpu.pipeline_mode<synchronous>, transform_indices = @transform_3, window_bounds = array<i64: 64, 3>}, {pipeline_mode = #tpu.pipeline_mode<synchronous>, transform_indices = @transform_4, window_bounds = array<i64: 1, 3>}, {transform_indices = @transform_5, window_bounds = array<i64: 512, 3>}]} {
    %c0 = arith.constant 0 : index
    %c0_0 = arith.constant 0 : index
    %0 = vector.load %arg1[%c0, %c0_0] : memref<512x99xbf16, #tpu.memory_space<vmem>>, vector<512x99xbf16>
    %c0_1 = arith.constant 0 : index
    %c0_2 = arith.constant 0 : index
    %1 = vector.load %arg2[%c0_1, %c0_2] : memref<99x64xbf16, #tpu.memory_space<vmem>>, vector<99x64xbf16>
    %cst = arith.constant dense<0.000000e+00> : vector<512x64xf32>
    %2 = tpu.matmul %0, %1, %cst {dimension_numbers = #tpu.dot_dimension_numbers<[1], [0], [0], [1], [0, 0, 1, 1], [], []>} : vector<512x99xbf16>, vector<99x64xbf16>, vector<512x64xf32> -> vector<512x64xf32>
    %c0_3 = arith.constant 0 : index
    %c0_4 = arith.constant 0 : index
    %3 = vector.load %arg3[%c0_3, %c0_4] : memref<1x64xf32, #tpu.memory_space<vmem>>, vector<1x64xf32>
    %4 = vector.broadcast %3 : vector<1x64xf32> to vector<512x64xf32>
    %5 = arith.addf %2, %4 : vector<512x64xf32>
    %cst_5 = arith.constant 0.000000e+00 : f32
    %6 = vector.broadcast %cst_5 : f32 to vector<512x64xf32>
    %7 = arith.maximumf %5, %6 : vector<512x64xf32>
    %8 = arith.truncf %7 : vector<512x64xf32> to vector<512x64xbf16>
    %c0_6 = arith.constant 0 : index
    %c0_7 = arith.constant 0 : index
    %9 = vector.load %arg4[%c0_6, %c0_7] : memref<64x3xbf16, #tpu.memory_space<vmem>>, vector<64x3xbf16>
    %cst_8 = arith.constant dense<0.000000e+00> : vector<512x3xf32>
    %10 = tpu.matmul %8, %9, %cst_8 {dimension_numbers = #tpu.dot_dimension_numbers<[1], [0], [0], [1], [0, 0, 1, 1], [], []>} : vector<512x64xbf16>, vector<64x3xbf16>, vector<512x3xf32> -> vector<512x3xf32>
    %c0_9 = arith.constant 0 : index
    %c0_10 = arith.constant 0 : index
    %11 = vector.load %arg5[%c0_9, %c0_10] : memref<1x3xf32, #tpu.memory_space<vmem>>, vector<1x3xf32>
    %12 = vector.broadcast %11 : vector<1x3xf32> to vector<512x3xf32>
    %13 = arith.addf %10, %12 : vector<512x3xf32>
    %c0_11 = arith.constant 0 : index
    %c0_12 = arith.constant 0 : index
    %14 = vector.load %arg6[%c0_11, %c0_12] : memref<512x3xf32, #tpu.memory_space<vmem>>, vector<512x3xf32>
    tpu.vector_store %arg6[%c0_11, %c0_12], %13 {strides = array<i32>} : memref<512x3xf32, #tpu.memory_space<vmem>>, vector<512x3xf32>,
    return
  }
  func.func @transform_0(%arg0: i32) -> (i32, i32) {
    %c0_i32 = arith.constant 0 : i32
    %c0_i32_0 = arith.constant 0 : i32
    return %arg0, %c0_i32 : i32, i32
  }
  func.func @transform_1(%arg0: i32) -> (i32, i32) {
    %c0_i32 = arith.constant 0 : i32
    %c0_i32_0 = arith.constant 0 : i32
    %c0_i32_1 = arith.constant 0 : i32
    return %c0_i32, %c0_i32_0 : i32, i32
  }
  func.func @transform_2(%arg0: i32) -> (i32, i32) {
    %c0_i32 = arith.constant 0 : i32
    %c0_i32_0 = arith.constant 0 : i32
    %c0_i32_1 = arith.constant 0 : i32
    return %c0_i32, %c0_i32_0 : i32, i32
  }
  func.func @transform_3(%arg0: i32) -> (i32, i32) {
    %c0_i32 = arith.constant 0 : i32
    %c0_i32_0 = arith.constant 0 : i32
    %c0_i32_1 = arith.constant 0 : i32
    return %c0_i32, %c0_i32_0 : i32, i32
  }
  func.func @transform_4(%arg0: i32) -> (i32, i32) {
    %c0_i32 = arith.constant 0 : i32
    %c0_i32_0 = arith.constant 0 : i32
    %c0_i32_1 = arith.constant 0 : i32
    return %c0_i32, %c0_i32_0 : i32, i32
  }
  func.func @transform_5(%arg0: i32) -> (i32, i32) {
    %c0_i32 = arith.constant 0 : i32
    %c0_i32_0 = arith.constant 0 : i32
    return %arg0, %c0_i32 : i32, i32
  }
}

</mosaic_0001>

<llo_original>
// kernel: tpu_custom_call.1
$region0: #{tpu_custom_call.1}
  #allocation0 [shape = 'u32[]', space=smem, size = 0x4, offset = 0x4, fixed_abs, tag = 'smem constant byte address 0x4 - core index']
  #allocation1 [shape = 'u32[72,128]{1,0:T(1,128)}', space=vmem, size = 0x9000, scoped, tag = 'internal scratch']
  %s0 = inlined_call_operand.vmem [shape: bf16[1037,99], index: 0, kind: input, shape index: {}]
  %s1 = inlined_call_operand.vmem [shape: bf16[99,64], index: 1, kind: input, shape index: {}]
  %s2 = inlined_call_operand.vmem [shape: f32[1,64], index: 2, kind: input, shape index: {}]
  %s3 = inlined_call_operand.vmem [shape: bf16[64,3], index: 3, kind: input, shape index: {}]
  %s4 = inlined_call_operand.vmem [shape: f32[1,3], index: 4, kind: input, shape index: {}]
  %s5 = inlined_call_operand.vmem [shape: f32[1037,3], index: 5, kind: output, shape index: {}]
  %s6 = sld [smem:[#allocation0]]
  $region101: #{tpu_custom_call.1} parent=0
    _
  %s8 = ssub.s32 1, %s6
  %s9 = scalar_select 0, %s8, %s6
  $region1: #{tpu_custom_call.1} parent=0
    #allocation2 [shape = 'u8[524288]{0}', space=vmem, size = 0x80000, scoped, tag = 'output window, operand 0']
    loop: start=0, step=1, limit=5
    $region2: #{tpu_custom_call.1} parent=1 // loop_pre_header
      _
    $region3: #{tpu_custom_call.1} parent=1 // loop_header
      %s11 = sphi 0, %s15
      %p12 = scmp.ge.s32.totalorder %s11, 5
      %s21 = sphi 0, %s23
      %s24 = sphi 0, %s21
      %s25 = sphi 0, %s24
      %s41 = sphi 0, %s25
      %s45 = sphi 0, %s45
      %s47 = sphi 0, %s45
      %s48 = sphi 0, %s47
      %s62 = sphi 0, %s48
      %s66 = sphi 0, %s66
      %s68 = sphi 0, %s66
      %s69 = sphi 0, %s68
      %s83 = sphi 0, %s69
      %s87 = sphi 0, %s87
      %s89 = sphi 0, %s87
      %s90 = sphi 0, %s89
      %s104 = sphi 0, %s90
      %s108 = sphi 0, %s108
      %s110 = sphi 0, %s108
      %s111 = sphi 0, %s110
      %s125 = sphi 0, %s111
      %s131 = sphi 0, %s133
      %s134 = sphi 0, %s131
      %s135 = sphi 0, %s134
      %s151 = sphi 0, %s135
    $region4: #{tpu_custom_call.1} parent=1 // loop_header_branch
      %14 = sbr.rel (%p12) target = $region8
    $region5: #{tpu_custom_call.1} parent=1 // loop_body
      %s16 = ssub.s32 %s11, 1
      %s17 = ssub.s32 %s11, 2
      %s18 = sadd.s32 %s11, 1
      %s19 = ssub.s32 %s11, %s18
      %p20 = scmp.eq.s32.totalorder %s19, 0
      %s22 = sadd.s32 %s21, 1
      %s23 = scalar_select %p20, %s21, %s22
      %p26 = pneg %p20
      %p27 = scmp.eq.s32.totalorder %s11, 2
      %p28 = por %p26, %p27
      %p29 = scmp.ne.s32.totalorder %s21, %s24
      %p30 = scmp.eq.s32.totalorder %s11, 0
      %p31 = por %p29, %p30
      %p32 = scmp.ne.s32.totalorder %s21, %s24
      %p33 = scmp.eq.s32.totalorder %s16, 2
      %p34 = por %p32, %p33
      %p35 = scmp.ne.s32.totalorder %s24, %s25
      %p36 = scmp.eq.s32.totalorder %s16, 0
      %p37 = por %p35, %p36
      %p38 = scmp.ne.s32.totalorder %s24, %s25
      %p39 = scmp.eq.s32.totalorder %s17, 2
      %p40 = por %p38, %p39
      %p42 = scmp.ne.s32.totalorder %s25, %s41
      %p43 = scmp.eq.s32.totalorder %s17, 0
      %p44 = por %p42, %p43
      %s46 = sadd.s32 %s45, 1
      %p49 = scmp.eq.s32.totalorder %s11, 2
      %p50 = scmp.ne.s32.totalorder %s45, %s47
      %p51 = scmp.eq.s32.totalorder %s11, 0
      %p52 = por %p50, %p51
      %p53 = scmp.ne.s32.totalorder %s45, %s47
      %p54 = scmp.eq.s32.totalorder %s16, 2
      %p55 = por %p53, %p54
      %p56 = scmp.ne.s32.totalorder %s47, %s48
      %p57 = scmp.eq.s32.totalorder %s16, 0
      %p58 = por %p56, %p57
      %p59 = scmp.ne.s32.totalorder %s47, %s48
      %p60 = scmp.eq.s32.totalorder %s17, 2
      %p61 = por %p59, %p60
      %p63 = scmp.ne.s32.totalorder %s48, %s62
      %p64 = scmp.eq.s32.totalorder %s17, 0
      %p65 = por %p63, %p64
      %s67 = sadd.s32 %s66, 1
      %p70 = scmp.eq.s32.totalorder %s11, 2
      %p71 = scmp.ne.s32.totalorder %s66, %s68
      %p72 = scmp.eq.s32.totalorder %s11, 0
      %p73 = por %p71, %p72
      %p74 = scmp.ne.s32.totalorder %s66, %s68
      %p75 = scmp.eq.s32.totalorder %s16, 2
      %p76 = por %p74, %p75
      %p77 = scmp.ne.s32.totalorder %s68, %s69
      %p78 = scmp.eq.s32.totalorder %s16, 0
      %p79 = por %p77, %p78
      %p80 = scmp.ne.s32.totalorder %s68, %s69
      %p81 = scmp.eq.s32.totalorder %s17, 2
      %p82 = por %p80, %p81
      %p84 = scmp.ne.s32.totalorder %s69, %s83
      %p85 = scmp.eq.s32.totalorder %s17, 0
      %p86 = por %p84, %p85
      %s88 = sadd.s32 %s87, 1
      %p91 = scmp.eq.s32.totalorder %s11, 2
      %p92 = scmp.ne.s32.totalorder %s87, %s89
      %p93 = scmp.eq.s32.totalorder %s11, 0
      %p94 = por %p92, %p93
      %p95 = scmp.ne.s32.totalorder %s87, %s89
      %p96 = scmp.eq.s32.totalorder %s16, 2
      %p97 = por %p95, %p96
      %p98 = scmp.ne.s32.totalorder %s89, %s90
      %p99 = scmp.eq.s32.totalorder %s16, 0
      %p100 = por %p98, %p99
      %p101 = scmp.ne.s32.totalorder %s89, %s90
      %p102 = scmp.eq.s32.totalorder %s17, 2
      %p103 = por %p101, %p102
      %p105 = scmp.ne.s32.totalorder %s90, %s104
      %p106 = scmp.eq.s32.totalorder %s17, 0
      %p107 = por %p105, %p106
      %s109 = sadd.s32 %s108, 1
      %p112 = scmp.eq.s32.totalorder %s11, 2
      %p113 = scmp.ne.s32.totalorder %s108, %s110
      %p114 = scmp.eq.s32.totalorder %s11, 0
      %p115 = por %p113, %p114
      %p116 = scmp.ne.s32.totalorder %s108, %s110
      %p117 = scmp.eq.s32.totalorder %s16, 2
      %p118 = por %p116, %p117
      %p119 = scmp.ne.s32.totalorder %s110, %s111
      %p120 = scmp.eq.s32.totalorder %s16, 0
      %p121 = por %p119, %p120
      %p122 = scmp.ne.s32.totalorder %s110, %s111
      %p123 = scmp.eq.s32.totalorder %s17, 2
      %p124 = por %p122, %p123
      %p126 = scmp.ne.s32.totalorder %s111, %s125
      %p127 = scmp.eq.s32.totalorder %s17, 0
      %p128 = por %p126, %p127
      %s129 = ssub.s32 %s11, %s18
      %p130 = scmp.eq.s32.totalorder %s129, 0
      %s132 = sadd.s32 %s131, 1
      %s133 = scalar_select %p130, %s131, %s132
      %p136 = pneg %p130
      %p137 = scmp.eq.s32.totalorder %s11, 2
      %p138 = por %p136, %p137
      %p139 = scmp.ne.s32.totalorder %s131, %s134
      %p140 = scmp.eq.s32.totalorder %s11, 0
      %p141 = por %p139, %p140
      %p142 = scmp.ne.s32.totalorder %s131, %s134
      %p143 = scmp.eq.s32.totalorder %s16, 2
      %p144 = por %p142, %p143
      %p145 = scmp.ne.s32.totalorder %s134, %s135
      %p146 = scmp.eq.s32.totalorder %s16, 0
      %p147 = por %p145, %p146
      %p148 = scmp.ne.s32.totalorder %s134, %s135
      %p149 = scmp.eq.s32.totalorder %s17, 2
      %p150 = por %p148, %p149
      %p152 = scmp.ne.s32.totalorder %s135, %s151
      %p153 = scmp.eq.s32.totalorder %s17, 0
      %p154 = por %p152, %p153
      %p155 = scmp.le.s32.totalorder 1, %s11
      %p156 = scmp.lt.s32.totalorder %s11, 4
      %p157 = pnand %p155, %p156
      %p158 = pneg %p157
      // Predicated region
      $region9: #{tpu_custom_call.1} parent=5 // pred_check
        _
      $region10: #{tpu_custom_call.1} parent=5 // pred_check_branch
        %160 = sbr.rel (%p157) target = $region12
      $region11: #{tpu_custom_call.1} parent=5 // pred_region
        %s161 = ssub.s32 %s11, 1
        // Predicated region
        $region13: #{tpu_custom_call.1} parent=11 // pred_check
          %p162 = pneg %p58
        $region14: #{tpu_custom_call.1} parent=11 // pred_check_branch
          %164 = sbr.rel (%p162) target = $region16
        $region15: #{tpu_custom_call.1} parent=11 // pred_region
          _
        $region16: #{tpu_custom_call.1} parent=11 // pred_fallthru
          _
        // Predicated region
        $region17: #{tpu_custom_call.1} parent=11 // pred_check
          %p165 = pneg %p79
        $region18: #{tpu_custom_call.1} parent=11 // pred_check_branch
          %167 = sbr.rel (%p165) target = $region20
        $region19: #{tpu_custom_call.1} parent=11 // pred_region
          _
        $region20: #{tpu_custom_call.1} parent=11 // pred_fallthru
          _
        // Predicated region
        $region21: #{tpu_custom_call.1} parent=11 // pred_check
          %p168 = pneg %p100
        $region22: #{tpu_custom_call.1} parent=11 // pred_check_branch
          %170 = sbr.rel (%p168) target = $region24
        $region23: #{tpu_custom_call.1} parent=11 // pred_region
          _
        $region24: #{tpu_custom_call.1} parent=11 // pred_fallthru
          _
        // Predicated region
        $region25: #{tpu_custom_call.1} parent=11 // pred_check
          %p171 = pneg %p121
        $region26: #{tpu_custom_call.1} parent=11 // pred_check_branch
          %173 = sbr.rel (%p171) target = $region28
        $region27: #{tpu_custom_call.1} parent=11 // pred_region
          _
        $region28: #{tpu_custom_call.1} parent=11 // pred_fallthru
          _
      $region12: #{tpu_custom_call.1} parent=5 // pred_fallthru
        _
      %p174 = scmp.lt.s32.totalorder %s11, 3
      // Predicated region
      $region29: #{tpu_custom_call.1} parent=5 // pred_check
        %p175 = pneg %p174
      $region30: #{tpu_custom_call.1} parent=5 // pred_check_branch
        %177 = sbr.rel (%p175) target = $region32
      $region31: #{tpu_custom_call.1} parent=5 // pred_region
        // Predicated region
        $region33: #{tpu_custom_call.1} parent=31 // pred_check
          %p178 = pneg %p31
        $region34: #{tpu_custom_call.1} parent=31 // pred_check_branch
          %180 = sbr.rel (%p178) target = $region36
        $region35: #{tpu_custom_call.1} parent=31 // pred_region
          %s181 = smul.u32 64, %s11
          %s182 = ssub.s32 130, %s181
          %p183 = scmp.lt.s32.totalorder %s182, 64
          %s184 = scalar_select %p183, %s182, 64
          %s185 = smul.u32 4, %s184
          %p186 = scmp.lt.s32.totalorder %s181, 129
          %s187 = scalar_select %p186, %s181, 129
          %s188 = smul.addr %s187, 4
          %s189 = scalar_lea.vmem %s0, %s188
          %s190 = smul.u32 64, %s11
          %s191 = ssub.s32 130, %s190
          %p192 = scmp.lt.s32.totalorder %s191, 64
          %s193 = scalar_select %p192, %s191, 64
          %s194 = smul.u32 4, %s193
        $region36: #{tpu_custom_call.1} parent=31 // pred_fallthru
          _
      $region32: #{tpu_custom_call.1} parent=5 // pred_fallthru
        _
      %p195 = scmp.le.s32.totalorder 1, %s11
      %p196 = scmp.lt.s32.totalorder %s11, 4
      %p197 = pnand %p195, %p196
      %p198 = pneg %p197
      // Predicated region
      $region37: #{tpu_custom_call.1} parent=5 // pred_check
        _
      $region38: #{tpu_custom_call.1} parent=5 // pred_check_branch
        %200 = sbr.rel (%p197) target = $region40
      $region39: #{tpu_custom_call.1} parent=5 // pred_region
        %s201 = ssub.s32 %s11, 1
        %s202 = smul.u32 64, %s16
        %s203 = ssub.s32 130, %s202
        %p204 = scmp.lt.s32.totalorder %s203, 64
        %s205 = scalar_select %p204, %s203, 64
        %s206 = smul.u32 4, %s205
        %p207 = scmp.lt.s32.totalorder %s202, 129
        %s208 = scalar_select %p207, %s202, 129
        %s209 = smul.addr %s208, 4
        %s210 = scalar_lea.vmem %s0, %s209
        %p211 = pneg %p37
        %p212 = pneg %p34
        %p213 = pneg %p58
        %p214 = pneg %p55
        %p215 = pneg %p79
        %p216 = pneg %p76
        %p217 = pneg %p100
        %p218 = pneg %p97
        %p219 = pneg %p121
        %p220 = pneg %p118
        %p221 = pneg %p147
        %p222 = pneg %p144
        %s223 = sand.u32 %s134, 1
        %s224 = sand.u32 %s134, 1
        %s225 = smul.addr %s224, 512
        %s226 = scalar_lea.vmem [#allocation2], %s225
        %s227 = smul.u32 64, %s16
        %s228 = ssub.s32 130, %s227
        %p229 = scmp.lt.s32.totalorder %s228, 64
        %s230 = scalar_select %p229, %s228, 64
        %s231 = smul.u32 4, %s230
        %p232 = scmp.lt.s32.totalorder %s227, 129
        %s233 = scalar_select %p232, %s227, 129
        %s234 = smul.addr %s233, 4
        %s235 = scalar_lea.vmem %s0, %s234
        %s236 = smul.u32 64, %s16
        %s237 = ssub.s32 130, %s236
        %p238 = scmp.lt.s32.totalorder %s237, 64
        %s239 = scalar_select %p238, %s237, 64
        %s240 = smul.u32 4, %s239
        %s241 = smul.u32 64, %s16
        %s242 = ssub.s32 130, %s241
        %p243 = scmp.lt.s32.totalorder %s242, 64
        %s244 = scalar_select %p243, %s242, 64
        %s245 = smul.u32 8, %s244
        %v247 = vld [vmem:[%s235] sm:$0xf]
        %v248 = vld [vmem:[%s235 + $0x4] sm:$0xf]
        %v249 = vld [vmem:[%s235 + $0x8] sm:$0xf]
        %v250 = vld [vmem:[%s235 + $0xc] sm:$0xf]
        %v251 = vld [vmem:[%s235 + $0x10] sm:$0xf]
        %v252 = vld [vmem:[%s235 + $0x14] sm:$0xf]
        %v253 = vld [vmem:[%s235 + $0x18] sm:$0xf]
        %v254 = vld [vmem:[%s235 + $0x1c] sm:$0xf]
        %v255 = vld [vmem:[%s235 + $0x20] sm:$0xf]
        %v256 = vld [vmem:[%s235 + $0x24] sm:$0xf]
        %v257 = vld [vmem:[%s235 + $0x28] sm:$0xf]
        %v258 = vld [vmem:[%s235 + $0x2c] sm:$0xf]
        %v259 = vld [vmem:[%s235 + $0x30] sm:$0xf]
        %v260 = vld [vmem:[%s235 + $0x34] sm:$0xf]
        %v261 = vld [vmem:[%s235 + $0x38] sm:$0xf]
        %v262 = vld [vmem:[%s235 + $0x3c] sm:$0xf]
        %v263 = vld [vmem:[%s235 + $0x40] sm:$0xf]
        %v264 = vld [vmem:[%s235 + $0x44] sm:$0xf]
        %v265 = vld [vmem:[%s235 + $0x48] sm:$0xf]
        %v266 = vld [vmem:[%s235 + $0x4c] sm:$0xf]
        %v267 = vld [vmem:[%s235 + $0x50] sm:$0xf]
        %v268 = vld [vmem:[%s235 + $0x54] sm:$0xf]
        %v269 = vld [vmem:[%s235 + $0x58] sm:$0xf]
        %v270 = vld [vmem:[%s235 + $0x5c] sm:$0xf]
        %v271 = vld [vmem:[%s235 + $0x60] sm:$0xf]
        %v272 = vld [vmem:[%s235 + $0x64] sm:$0xf]
        %v273 = vld [vmem:[%s235 + $0x68] sm:$0xf]
        %v274 = vld [vmem:[%s235 + $0x6c] sm:$0xf]
        %v275 = vld [vmem:[%s235 + $0x70] sm:$0xf]
        %v276 = vld [vmem:[%s235 + $0x74] sm:$0xf]
        %v277 = vld [vmem:[%s235 + $0x78] sm:$0xf]
        %v278 = vld [vmem:[%s235 + $0x7c] sm:$0xf]
        %v279 = vld [vmem:[%s235 + $0x80] sm:$0xf]
        %v280 = vld [vmem:[%s235 + $0x84] sm:$0xf]
        %v281 = vld [vmem:[%s235 + $0x88] sm:$0xf]
        %v282 = vld [vmem:[%s235 + $0x8c] sm:$0xf]
        %v283 = vld [vmem:[%s235 + $0x90] sm:$0xf]
        %v284 = vld [vmem:[%s235 + $0x94] sm:$0xf]
        %v285 = vld [vmem:[%s235 + $0x98] sm:$0xf]
        %v286 = vld [vmem:[%s235 + $0x9c] sm:$0xf]
        %v287 = vld [vmem:[%s235 + $0xa0] sm:$0xf]
        %v288 = vld [vmem:[%s235 + $0xa4] sm:$0xf]
        %v289 = vld [vmem:[%s235 + $0xa8] sm:$0xf]
        %v290 = vld [vmem:[%s235 + $0xac] sm:$0xf]
        %v291 = vld [vmem:[%s235 + $0xb0] sm:$0xf]
        %v292 = vld [vmem:[%s235 + $0xb4] sm:$0xf]
        %v293 = vld [vmem:[%s235 + $0xb8] sm:$0xf]
        %v294 = vld [vmem:[%s235 + $0xbc] sm:$0xf]
        %v295 = vld [vmem:[%s235 + $0xc0] sm:$0xf]
        %v296 = vld [vmem:[%s235 + $0xc4] sm:$0xf]
        %v297 = vld [vmem:[%s235 + $0xc8] sm:$0xf]
        %v298 = vld [vmem:[%s235 + $0xcc] sm:$0xf]
        %v299 = vld [vmem:[%s235 + $0xd0] sm:$0xf]
        %v300 = vld [vmem:[%s235 + $0xd4] sm:$0xf]
        %v301 = vld [vmem:[%s235 + $0xd8] sm:$0xf]
        %v302 = vld [vmem:[%s235 + $0xdc] sm:$0xf]
        %v303 = vld [vmem:[%s235 + $0xe0] sm:$0xf]
        %v304 = vld [vmem:[%s235 + $0xe4] sm:$0xf]
        %v305 = vld [vmem:[%s235 + $0xe8] sm:$0xf]
        %v306 = vld [vmem:[%s235 + $0xec] sm:$0xf]
        %v307 = vld [vmem:[%s235 + $0xf0] sm:$0xf]
        %v308 = vld [vmem:[%s235 + $0xf4] sm:$0xf]
        %v309 = vld [vmem:[%s235 + $0xf8] sm:$0xf]
        %v310 = vld [vmem:[%s235 + $0xfc] sm:$0xf]
        %v311 = vld [vmem:[%s1] sm:$0xf]
        %v312 = vld [vmem:[%s1 + $0x4] sm:$0xf]
        %v313 = vld [vmem:[%s1 + $0x8] sm:$0xf]
        %v314 = vld [vmem:[%s1 + $0xc] sm:$0xf]
        %v315 = vld [vmem:[%s1 + $0x10] sm:$0xf]
        %v316 = vld [vmem:[%s1 + $0x14] sm:$0xf]
        %v317 = vld [vmem:[%s1 + $0x18] sm:$0xf]
        %v318 = vld [vmem:[%s1 + $0x1c] sm:$0xf]
        %v319 = vld [vmem:[%s1 + $0x20] sm:$0xf]
        %v320 = vld [vmem:[%s1 + $0x24] sm:$0xf]
        %v321 = vld [vmem:[%s1 + $0x28] sm:$0xf]
        %v322 = vld [vmem:[%s1 + $0x2c] sm:$0xf]
        %v323 = vld [vmem:[%s1 + $0x30] sm:$0x3]
        %v324 = vld [vmem:[%s2] sm:$0x1]
        %v326 = vperm.slane %v324, 0
        %v392 = vunpack.c.l.b16 %v247
        %v393 = vunpack.c.l.b16 %v248
        %v394 = vunpack.c.l.b16 %v249
        %v395 = vunpack.c.l.b16 %v250
        %v396 = vunpack.c.l.b16 %v251
        %v397 = vunpack.c.l.b16 %v252
        %v398 = vunpack.c.l.b16 %v253
        %v399 = vunpack.c.l.b16 %v254
        %v400 = vunpack.c.l.b16 %v255
        %v401 = vunpack.c.l.b16 %v256
        %v402 = vunpack.c.l.b16 %v257
        %v403 = vunpack.c.l.b16 %v258
        %v404 = vunpack.c.l.b16 %v259
        %v405 = vunpack.c.l.b16 %v260
        %v406 = vunpack.c.l.b16 %v261
        %v407 = vunpack.c.l.b16 %v262
        %v408 = vunpack.c.l.b16 %v263
        %v409 = vunpack.c.l.b16 %v264
        %v410 = vunpack.c.l.b16 %v265
        %v411 = vunpack.c.l.b16 %v266
        %v412 = vunpack.c.l.b16 %v267
        %v413 = vunpack.c.l.b16 %v268
        %v414 = vunpack.c.l.b16 %v269
        %v415 = vunpack.c.l.b16 %v270
        %v416 = vunpack.c.l.b16 %v271
        %v417 = vunpack.c.l.b16 %v272
        %v418 = vunpack.c.l.b16 %v273
        %v419 = vunpack.c.l.b16 %v274
        %v420 = vunpack.c.l.b16 %v275
        %v421 = vunpack.c.l.b16 %v276
        %v422 = vunpack.c.l.b16 %v277
        %v423 = vunpack.c.l.b16 %v278
        %v424 = vunpack.c.l.b16 %v279
        %v425 = vunpack.c.l.b16 %v280
        %v426 = vunpack.c.l.b16 %v281
        %v427 = vunpack.c.l.b16 %v282
        %v428 = vunpack.c.l.b16 %v283
        %v429 = vunpack.c.l.b16 %v284
        %v430 = vunpack.c.l.b16 %v285
        %v431 = vunpack.c.l.b16 %v286
        %v432 = vunpack.c.l.b16 %v287
        %v433 = vunpack.c.l.b16 %v288
        %v434 = vunpack.c.l.b16 %v289
        %v435 = vunpack.c.l.b16 %v290
        %v436 = vunpack.c.l.b16 %v291
        %v437 = vunpack.c.l.b16 %v292
        %v438 = vunpack.c.l.b16 %v293
        %v439 = vunpack.c.l.b16 %v294
        %v440 = vunpack.c.l.b16 %v295
        %v441 = vunpack.c.l.b16 %v296
        %v442 = vunpack.c.l.b16 %v297
        %v443 = vunpack.c.l.b16 %v298
        %v444 = vunpack.c.l.b16 %v299
        %v445 = vunpack.c.l.b16 %v300
        %v446 = vunpack.c.l.b16 %v301
        %v447 = vunpack.c.l.b16 %v302
        %v448 = vunpack.c.l.b16 %v303
        %v449 = vunpack.c.l.b16 %v304
        %v450 = vunpack.c.l.b16 %v305
        %v451 = vunpack.c.l.b16 %v306
        %v452 = vunpack.c.l.b16 %v307
        %v453 = vunpack.c.l.b16 %v308
        %v454 = vunpack.c.l.b16 %v309
        %v455 = vunpack.c.l.b16 %v310
        %v456 = vpack.c.b16 %v393, %v392
        %v457 = vpack.c.b16 %v395, %v394
        %v458 = vpack.c.b16 %v397, %v396
        %v459 = vpack.c.b16 %v399, %v398
        %v460 = vpack.c.b16 %v401, %v400
        %v461 = vpack.c.b16 %v403, %v402
        %v462 = vpack.c.b16 %v405, %v404
        %v463 = vpack.c.b16 %v407, %v406
        %v464 = vpack.c.b16 %v409, %v408
        %v465 = vpack.c.b16 %v411, %v410
        %v466 = vpack.c.b16 %v413, %v412
        %v467 = vpack.c.b16 %v415, %v414
        %v468 = vpack.c.b16 %v417, %v416
        %v469 = vpack.c.b16 %v419, %v418
        %v470 = vpack.c.b16 %v421, %v420
        %v471 = vpack.c.b16 %v423, %v422
        %v472 = vpack.c.b16 %v425, %v424
        %v473 = vpack.c.b16 %v427, %v426
        %v474 = vpack.c.b16 %v429, %v428
        %v475 = vpack.c.b16 %v431, %v430
        %v476 = vpack.c.b16 %v433, %v432
        %v477 = vpack.c.b16 %v435, %v434
        %v478 = vpack.c.b16 %v437, %v436
        %v479 = vpack.c.b16 %v439, %v438
        %v480 = vpack.c.b16 %v441, %v440
        %v481 = vpack.c.b16 %v443, %v442
        %v482 = vpack.c.b16 %v445, %v444
        %v483 = vpack.c.b16 %v447, %v446
        %v484 = vpack.c.b16 %v449, %v448
        %v485 = vpack.c.b16 %v451, %v450
        %v486 = vpack.c.b16 %v453, %v452
        %v487 = vpack.c.b16 %v455, %v454
        %v501 = vunpack.c.l.b16 %v311
        %v502 = vunpack.c.l.b16 %v312
        %v503 = vunpack.c.l.b16 %v313
        %v504 = vunpack.c.l.b16 %v314
        %v505 = vunpack.c.l.b16 %v315
        %v506 = vunpack.c.l.b16 %v316
        %v507 = vunpack.c.l.b16 %v317
        %v508 = vunpack.c.l.b16 %v318
        %v509 = vunpack.c.l.b16 %v319
        %v510 = vunpack.c.l.b16 %v320
        %v511 = vunpack.c.l.b16 %v321
        %v512 = vunpack.c.l.b16 %v322
        %v513 = vunpack.c.l.b16 %v323
        %v514 = vpack.c.b16 %v502, %v501
        %v515 = vpack.c.b16 %v504, %v503
        %v516 = vpack.c.b16 %v506, %v505
        %v517 = vpack.c.b16 %v508, %v507
        %v518 = vpack.c.b16 %v510, %v509
        %v519 = vpack.c.b16 %v512, %v511
        %v520 = vpack.c.b16 %v513, %v513
        %vm527 = vcmask 809984
        %v529 = vsel %vm527, %v456, 0
        %v532 = vsel %vm527, %v457, 0
        %v535 = vsel %vm527, %v458, 0
        %v538 = vsel %vm527, %v459, 0
        %v541 = vsel %vm527, %v460, 0
        %v544 = vsel %vm527, %v461, 0
        %v547 = vsel %vm527, %v462, 0
        %v550 = vsel %vm527, %v463, 0
        %v553 = vsel %vm527, %v464, 0
        %v556 = vsel %vm527, %v465, 0
        %v559 = vsel %vm527, %v466, 0
        %v562 = vsel %vm527, %v467, 0
        %v565 = vsel %vm527, %v468, 0
        %v568 = vsel %vm527, %v469, 0
        %v571 = vsel %vm527, %v470, 0
        %v574 = vsel %vm527, %v471, 0
        %v577 = vsel %vm527, %v472, 0
        %v580 = vsel %vm527, %v473, 0
        %v583 = vsel %vm527, %v474, 0
        %v586 = vsel %vm527, %v475, 0
        %v589 = vsel %vm527, %v476, 0
        %v592 = vsel %vm527, %v477, 0
        %v595 = vsel %vm527, %v478, 0
        %v598 = vsel %vm527, %v479, 0
        %v601 = vsel %vm527, %v480, 0
        %v604 = vsel %vm527, %v481, 0
        %v607 = vsel %vm527, %v482, 0
        %v610 = vsel %vm527, %v483, 0
        %v613 = vsel %vm527, %v484, 0
        %v616 = vsel %vm527, %v485, 0
        %v619 = vsel %vm527, %v486, 0
        %v622 = vsel %vm527, %v487, 0
        %vm624 = vcmask 1040384
        %vm625 = vcmask 1041408
        %v626 = vsel %vm624, 4294967295, 65535
        %v627 = vsel %vm625, %v626, 0
        %v629 = vand.u32 %v520, %v627
        %631 = vmatpush.bf16.msra.mxu0 0
        %632 = vmatpush.bf16.msra.mxu0 %v629
        %633 = vmatpush.bf16.msra.mxu0 %v519
        %634 = vmatpush.bf16.msra.mxu0 %v518
        %635 = vmatpush.bf16.msra.mxu0 %v517
        %636 = vmatpush.bf16.msra.mxu0 %v516
        %637 = vmatpush.bf16.msra.mxu0 %v515
        %638 = vmatpush.bf16.msra.mxu0 %v514
        %639 = vmatmul.bf16.gmra.mxu0 %v529
        %v640 = vpop.f32.mrf.mxu0
        %v641 = vadd.f32 %v326, %v640
        %v642 = vpop.f32.mrf.mxu0
        %v643 = vadd.f32 %v326, %v642
        %644 = vmatmul.bf16.gmra.mxu0 %v532
        %v645 = vpop.f32.mrf.mxu0
        %v646 = vadd.f32 %v326, %v645
        %v647 = vpop.f32.mrf.mxu0
        %v648 = vadd.f32 %v326, %v647
        %649 = vmatmul.bf16.gmra.mxu0 %v535
        %v650 = vpop.f32.mrf.mxu0
        %v651 = vadd.f32 %v326, %v650
        %v652 = vpop.f32.mrf.mxu0
        %v653 = vadd.f32 %v326, %v652
        %654 = vmatmul.bf16.gmra.mxu0 %v538
        %v655 = vpop.f32.mrf.mxu0
        %v656 = vadd.f32 %v326, %v655
        %v657 = vpop.f32.mrf.mxu0
        %v658 = vadd.f32 %v326, %v657
        %659 = vmatmul.bf16.gmra.mxu0 %v541
        %v660 = vpop.f32.mrf.mxu0
        %v661 = vadd.f32 %v326, %v660
        %v662 = vpop.f32.mrf.mxu0
        %v663 = vadd.f32 %v326, %v662
        %664 = vmatmul.bf16.gmra.mxu0 %v544
        %v665 = vpop.f32.mrf.mxu0
        %v666 = vadd.f32 %v326, %v665
        %v667 = vpop.f32.mrf.mxu0
        %v668 = vadd.f32 %v326, %v667
        %669 = vmatmul.bf16.gmra.mxu0 %v547
        %v670 = vpop.f32.mrf.mxu0
        %v671 = vadd.f32 %v326, %v670
        %v672 = vpop.f32.mrf.mxu0
        %v673 = vadd.f32 %v326, %v672
        %674 = vmatmul.bf16.gmra.mxu0 %v550
        %v675 = vpop.f32.mrf.mxu0
        %v676 = vadd.f32 %v326, %v675
        %v677 = vpop.f32.mrf.mxu0
        %v678 = vadd.f32 %v326, %v677
        %679 = vmatmul.bf16.gmra.mxu0 %v553
        %v680 = vpop.f32.mrf.mxu0
        %v681 = vadd.f32 %v326, %v680
        %v682 = vpop.f32.mrf.mxu0
        %v683 = vadd.f32 %v326, %v682
        %684 = vmatmul.bf16.gmra.mxu0 %v556
        %v685 = vpop.f32.mrf.mxu0
        %v686 = vadd.f32 %v326, %v685
        %v687 = vpop.f32.mrf.mxu0
        %v688 = vadd.f32 %v326, %v687
        %689 = vmatmul.bf16.gmra.mxu0 %v559
        %v690 = vpop.f32.mrf.mxu0
        %v691 = vadd.f32 %v326, %v690
        %v692 = vpop.f32.mrf.mxu0
        %v693 = vadd.f32 %v326, %v692
        %694 = vmatmul.bf16.gmra.mxu0 %v562
        %v695 = vpop.f32.mrf.mxu0
        %v696 = vadd.f32 %v326, %v695
        %v697 = vpop.f32.mrf.mxu0
        %v698 = vadd.f32 %v326, %v697
        %699 = vmatmul.bf16.gmra.mxu0 %v565
        %v700 = vpop.f32.mrf.mxu0
        %v701 = vadd.f32 %v326, %v700
        %v702 = vpop.f32.mrf.mxu0
        %v703 = vadd.f32 %v326, %v702
        %704 = vmatmul.bf16.gmra.mxu0 %v568
        %v705 = vpop.f32.mrf.mxu0
        %v706 = vadd.f32 %v326, %v705
        %v707 = vpop.f32.mrf.mxu0
        %v708 = vadd.f32 %v326, %v707
        %709 = vmatmul.bf16.gmra.mxu0 %v571
        %v710 = vpop.f32.mrf.mxu0
        %v711 = vadd.f32 %v326, %v710
        %v712 = vpop.f32.mrf.mxu0
        %v713 = vadd.f32 %v326, %v712
        %714 = vmatmul.bf16.gmra.mxu0 %v574
        %v715 = vpop.f32.mrf.mxu0
        %v716 = vadd.f32 %v326, %v715
        %v717 = vpop.f32.mrf.mxu0
        %v718 = vadd.f32 %v326, %v717
        %719 = vmatmul.bf16.gmra.mxu0 %v577
        %v720 = vpop.f32.mrf.mxu0
        %v721 = vadd.f32 %v326, %v720
        %v722 = vpop.f32.mrf.mxu0
        %v723 = vadd.f32 %v326, %v722
        %724 = vmatmul.bf16.gmra.mxu0 %v580
        %v725 = vpop.f32.mrf.mxu0
        %v726 = vadd.f32 %v326, %v725
        %v727 = vpop.f32.mrf.mxu0
        %v728 = vadd.f32 %v326, %v727
        %729 = vmatmul.bf16.gmra.mxu0 %v583
        %v730 = vpop.f32.mrf.mxu0
        %v731 = vadd.f32 %v326, %v730
        %v732 = vpop.f32.mrf.mxu0
        %v733 = vadd.f32 %v326, %v732
        %734 = vmatmul.bf16.gmra.mxu0 %v586
        %v735 = vpop.f32.mrf.mxu0
        %v736 = vadd.f32 %v326, %v735
        %v737 = vpop.f32.mrf.mxu0
        %v738 = vadd.f32 %v326, %v737
        %739 = vmatmul.bf16.gmra.mxu0 %v589
        %v740 = vpop.f32.mrf.mxu0
        %v741 = vadd.f32 %v326, %v740
        %v742 = vpop.f32.mrf.mxu0
        %v743 = vadd.f32 %v326, %v742
        %744 = vmatmul.bf16.gmra.mxu0 %v592
        %v745 = vpop.f32.mrf.mxu0
        %v746 = vadd.f32 %v326, %v745
        %v747 = vpop.f32.mrf.mxu0
        %v748 = vadd.f32 %v326, %v747
        %749 = vmatmul.bf16.gmra.mxu0 %v595
        %v750 = vpop.f32.mrf.mxu0
        %v751 = vadd.f32 %v326, %v750
        %v752 = vpop.f32.mrf.mxu0
        %v753 = vadd.f32 %v326, %v752
        %754 = vmatmul.bf16.gmra.mxu0 %v598
        %v755 = vpop.f32.mrf.mxu0
        %v756 = vadd.f32 %v326, %v755
        %v757 = vpop.f32.mrf.mxu0
        %v758 = vadd.f32 %v326, %v757
        %759 = vmatmul.bf16.gmra.mxu0 %v601
        %v760 = vpop.f32.mrf.mxu0
        %v761 = vadd.f32 %v326, %v760
        %v762 = vpop.f32.mrf.mxu0
        %v763 = vadd.f32 %v326, %v762
        %764 = vmatmul.bf16.gmra.mxu0 %v604
        %v765 = vpop.f32.mrf.mxu0
        %v766 = vadd.f32 %v326, %v765
        %v767 = vpop.f32.mrf.mxu0
        %v768 = vadd.f32 %v326, %v767
        %769 = vmatmul.bf16.gmra.mxu0 %v607
        %v770 = vpop.f32.mrf.mxu0
        %v771 = vadd.f32 %v326, %v770
        %v772 = vpop.f32.mrf.mxu0
        %v773 = vadd.f32 %v326, %v772
        %774 = vmatmul.bf16.gmra.mxu0 %v610
        %v775 = vpop.f32.mrf.mxu0
        %v776 = vadd.f32 %v326, %v775
        %v777 = vpop.f32.mrf.mxu0
        %v778 = vadd.f32 %v326, %v777
        %779 = vmatmul.bf16.gmra.mxu0 %v613
        %v780 = vpop.f32.mrf.mxu0
        %v781 = vadd.f32 %v326, %v780
        %v782 = vpop.f32.mrf.mxu0
        %v783 = vadd.f32 %v326, %v782
        %784 = vmatmul.bf16.gmra.mxu0 %v616
        %v785 = vpop.f32.mrf.mxu0
        %v786 = vadd.f32 %v326, %v785
        %v787 = vpop.f32.mrf.mxu0
        %v788 = vadd.f32 %v326, %v787
        %789 = vmatmul.bf16.gmra.mxu0 %v619
        %v790 = vpop.f32.mrf.mxu0
        %v791 = vadd.f32 %v326, %v790
        %v792 = vpop.f32.mrf.mxu0
        %v793 = vadd.f32 %v326, %v792
        %794 = vmatmul.bf16.gmra.mxu0 %v622
        %v795 = vpop.f32.mrf.mxu0
        %v796 = vadd.f32 %v326, %v795
        %v797 = vpop.f32.mrf.mxu0
        %v798 = vadd.f32 %v326, %v797
        %799 = vdwg.mxu0
        %v800 = vmax.f32 %v641, 0.0
        %v801 = vmax.f32 %v643, 0.0
        %v802 = vmax.f32 %v646, 0.0
        %v803 = vmax.f32 %v648, 0.0
        %v804 = vmax.f32 %v651, 0.0
        %v805 = vmax.f32 %v653, 0.0
        %v806 = vmax.f32 %v656, 0.0
        %v807 = vmax.f32 %v658, 0.0
        %v808 = vmax.f32 %v661, 0.0
        %v809 = vmax.f32 %v663, 0.0
        %v810 = vmax.f32 %v666, 0.0
        %v811 = vmax.f32 %v668, 0.0
        %v812 = vmax.f32 %v671, 0.0
        %v813 = vmax.f32 %v673, 0.0
        %v814 = vmax.f32 %v676, 0.0
        %v815 = vmax.f32 %v678, 0.0
        %v816 = vmax.f32 %v681, 0.0
        %v817 = vmax.f32 %v683, 0.0
        %v818 = vmax.f32 %v686, 0.0
        %v819 = vmax.f32 %v688, 0.0
        %v820 = vmax.f32 %v691, 0.0
        %v821 = vmax.f32 %v693, 0.0
        %v822 = vmax.f32 %v696, 0.0
        %v823 = vmax.f32 %v698, 0.0
        %v824 = vmax.f32 %v701, 0.0
        %v825 = vmax.f32 %v703, 0.0
        %v826 = vmax.f32 %v706, 0.0
        %v827 = vmax.f32 %v708, 0.0
        %v828 = vmax.f32 %v711, 0.0
        %v829 = vmax.f32 %v713, 0.0
        %v830 = vmax.f32 %v716, 0.0
        %v831 = vmax.f32 %v718, 0.0
        %v832 = vmax.f32 %v721, 0.0
        %v833 = vmax.f32 %v723, 0.0
        %v834 = vmax.f32 %v726, 0.0
        %v835 = vmax.f32 %v728, 0.0
        %v836 = vmax.f32 %v731, 0.0
        %v837 = vmax.f32 %v733, 0.0
        %v838 = vmax.f32 %v736, 0.0
        %v839 = vmax.f32 %v738, 0.0
        %v840 = vmax.f32 %v741, 0.0
        %v841 = vmax.f32 %v743, 0.0
        %v842 = vmax.f32 %v746, 0.0
        %v843 = vmax.f32 %v748, 0.0
        %v844 = vmax.f32 %v751, 0.0
        %v845 = vmax.f32 %v753, 0.0
        %v846 = vmax.f32 %v756, 0.0
        %v847 = vmax.f32 %v758, 0.0
        %v848 = vmax.f32 %v761, 0.0
        %v849 = vmax.f32 %v763, 0.0
        %v850 = vmax.f32 %v766, 0.0
        %v851 = vmax.f32 %v768, 0.0
        %v852 = vmax.f32 %v771, 0.0
        %v853 = vmax.f32 %v773, 0.0
        %v854 = vmax.f32 %v776, 0.0
        %v855 = vmax.f32 %v778, 0.0
        %v856 = vmax.f32 %v781, 0.0
        %v857 = vmax.f32 %v783, 0.0
        %v858 = vmax.f32 %v786, 0.0
        %v859 = vmax.f32 %v788, 0.0
        %v860 = vmax.f32 %v791, 0.0
        %v861 = vmax.f32 %v793, 0.0
        %v862 = vmax.f32 %v796, 0.0
        %v863 = vmax.f32 %v798, 0.0
        %v864 = vpack.c.bf16 %v801, %v800
        %v865 = vpack.c.bf16 %v803, %v802
        %v866 = vpack.c.bf16 %v805, %v804
        %v867 = vpack.c.bf16 %v807, %v806
        %v868 = vpack.c.bf16 %v809, %v808
        %v869 = vpack.c.bf16 %v811, %v810
        %v870 = vpack.c.bf16 %v813, %v812
        %v871 = vpack.c.bf16 %v815, %v814
        %v872 = vpack.c.bf16 %v817, %v816
        %v873 = vpack.c.bf16 %v819, %v818
        %v874 = vpack.c.bf16 %v821, %v820
        %v875 = vpack.c.bf16 %v823, %v822
        %v876 = vpack.c.bf16 %v825, %v824
        %v877 = vpack.c.bf16 %v827, %v826
        %v878 = vpack.c.bf16 %v829, %v828
        %v879 = vpack.c.bf16 %v831, %v830
        %v880 = vpack.c.bf16 %v833, %v832
        %v881 = vpack.c.bf16 %v835, %v834
        %v882 = vpack.c.bf16 %v837, %v836
        %v883 = vpack.c.bf16 %v839, %v838
        %v884 = vpack.c.bf16 %v841, %v840
        %v885 = vpack.c.bf16 %v843, %v842
        %v886 = vpack.c.bf16 %v845, %v844
        %v887 = vpack.c.bf16 %v847, %v846
        %v888 = vpack.c.bf16 %v849, %v848
        %v889 = vpack.c.bf16 %v851, %v850
        %v890 = vpack.c.bf16 %v853, %v852
        %v891 = vpack.c.bf16 %v855, %v854
        %v892 = vpack.c.bf16 %v857, %v856
        %v893 = vpack.c.bf16 %v859, %v858
        %v894 = vpack.c.bf16 %v861, %v860
        %v895 = vpack.c.bf16 %v863, %v862
        %v896 = vld [vmem:[%s3] sm:$0xf]
        %v897 = vld [vmem:[%s3 + $0x4] sm:$0xf]
        %v898 = vld [vmem:[%s3 + $0x8] sm:$0xf]
        %v899 = vld [vmem:[%s3 + $0xc] sm:$0xf]
        %v900 = vld [vmem:[%s3 + $0x10] sm:$0xf]
        %v901 = vld [vmem:[%s3 + $0x14] sm:$0xf]
        %v902 = vld [vmem:[%s3 + $0x18] sm:$0xf]
        %v903 = vld [vmem:[%s3 + $0x1c] sm:$0xf]
        %v904 = vld [vmem:[%s4] sm:$0x1]
        %v906 = vperm.slane %v904, 0
        %v916 = vunpack.c.l.b16 %v896
        %v917 = vunpack.c.l.b16 %v897
        %v918 = vunpack.c.l.b16 %v898
        %v919 = vunpack.c.l.b16 %v899
        %v920 = vunpack.c.l.b16 %v900
        %v921 = vunpack.c.l.b16 %v901
        %v922 = vunpack.c.l.b16 %v902
        %v923 = vunpack.c.l.b16 %v903
        %v924 = vpack.c.b16 %v917, %v916
        %v925 = vpack.c.b16 %v919, %v918
        %v926 = vpack.c.b16 %v921, %v920
        %v927 = vpack.c.b16 %v923, %v922
        %vm932 = vcmask 523264
        %v934 = vsel %vm932, %v864, 0
        %v937 = vsel %vm932, %v865, 0
        %v940 = vsel %vm932, %v866, 0
        %v943 = vsel %vm932, %v867, 0
        %v946 = vsel %vm932, %v868, 0
        %v949 = vsel %vm932, %v869, 0
        %v952 = vsel %vm932, %v870, 0
        %v955 = vsel %vm932, %v871, 0
        %v958 = vsel %vm932, %v872, 0
        %v961 = vsel %vm932, %v873, 0
        %v964 = vsel %vm932, %v874, 0
        %v967 = vsel %vm932, %v875, 0
        %v970 = vsel %vm932, %v876, 0
        %v973 = vsel %vm932, %v877, 0
        %v976 = vsel %vm932, %v878, 0
        %v979 = vsel %vm932, %v879, 0
        %v982 = vsel %vm932, %v880, 0
        %v985 = vsel %vm932, %v881, 0
        %v988 = vsel %vm932, %v882, 0
        %v991 = vsel %vm932, %v883, 0
        %v994 = vsel %vm932, %v884, 0
        %v997 = vsel %vm932, %v885, 0
        %v1000 = vsel %vm932, %v886, 0
        %v1003 = vsel %vm932, %v887, 0
        %v1006 = vsel %vm932, %v888, 0
        %v1009 = vsel %vm932, %v889, 0
        %v1012 = vsel %vm932, %v890, 0
        %v1015 = vsel %vm932, %v891, 0
        %v1018 = vsel %vm932, %v892, 0
        %v1021 = vsel %vm932, %v893, 0
        %v1024 = vsel %vm932, %v894, 0
        %v1027 = vsel %vm932, %v895, 0
        %1029 = vmatpush.bf16.msra.mxu0 0
        %1030 = vmatpush.bf16.msra.mxu0 0
        %1031 = vmatpush.bf16.msra.mxu0 0
        %1032 = vmatpush.bf16.msra.mxu0 0
        %1033 = vmatpush.bf16.msra.mxu0 %v927
        %1034 = vmatpush.bf16.msra.mxu0 %v926
        %1035 = vmatpush.bf16.msra.mxu0 %v925
        %1036 = vmatpush.bf16.msra.mxu0 %v924
        %1037 = vmatmul.bf16.gmra.mxu0 %v934
        %v1038 = vpop.f32.mrf.mxu0
        %v1039 = vadd.f32 %v906, %v1038
        %v1040 = vpop.f32.mrf.mxu0
        %v1041 = vadd.f32 %v906, %v1040
        %1042 = vmatmul.bf16.gmra.mxu0 %v937
        %v1043 = vpop.f32.mrf.mxu0
        %v1044 = vadd.f32 %v906, %v1043
        %v1045 = vpop.f32.mrf.mxu0
        %v1046 = vadd.f32 %v906, %v1045
        %1047 = vmatmul.bf16.gmra.mxu0 %v940
        %v1048 = vpop.f32.mrf.mxu0
        %v1049 = vadd.f32 %v906, %v1048
        %v1050 = vpop.f32.mrf.mxu0
        %v1051 = vadd.f32 %v906, %v1050
        %1052 = vmatmul.bf16.gmra.mxu0 %v943
        %v1053 = vpop.f32.mrf.mxu0
        %v1054 = vadd.f32 %v906, %v1053
        %v1055 = vpop.f32.mrf.mxu0
        %v1056 = vadd.f32 %v906, %v1055
        %1057 = vmatmul.bf16.gmra.mxu0 %v946
        %v1058 = vpop.f32.mrf.mxu0
        %v1059 = vadd.f32 %v906, %v1058
        %v1060 = vpop.f32.mrf.mxu0
        %v1061 = vadd.f32 %v906, %v1060
        %1062 = vmatmul.bf16.gmra.mxu0 %v949
        %v1063 = vpop.f32.mrf.mxu0
        %v1064 = vadd.f32 %v906, %v1063
        %v1065 = vpop.f32.mrf.mxu0
        %v1066 = vadd.f32 %v906, %v1065
        %1067 = vmatmul.bf16.gmra.mxu0 %v952
        %v1068 = vpop.f32.mrf.mxu0
        %v1069 = vadd.f32 %v906, %v1068
        %v1070 = vpop.f32.mrf.mxu0
        %v1071 = vadd.f32 %v906, %v1070
        %1072 = vmatmul.bf16.gmra.mxu0 %v955
        %v1073 = vpop.f32.mrf.mxu0
        %v1074 = vadd.f32 %v906, %v1073
        %v1075 = vpop.f32.mrf.mxu0
        %v1076 = vadd.f32 %v906, %v1075
        %1077 = vmatmul.bf16.gmra.mxu0 %v958
        %v1078 = vpop.f32.mrf.mxu0
        %v1079 = vadd.f32 %v906, %v1078
        %v1080 = vpop.f32.mrf.mxu0
        %v1081 = vadd.f32 %v906, %v1080
        %1082 = vmatmul.bf16.gmra.mxu0 %v961
        %v1083 = vpop.f32.mrf.mxu0
        %v1084 = vadd.f32 %v906, %v1083
        %v1085 = vpop.f32.mrf.mxu0
        %v1086 = vadd.f32 %v906, %v1085
        %1087 = vmatmul.bf16.gmra.mxu0 %v964
        %v1088 = vpop.f32.mrf.mxu0
        %v1089 = vadd.f32 %v906, %v1088
        %v1090 = vpop.f32.mrf.mxu0
        %v1091 = vadd.f32 %v906, %v1090
        %1092 = vmatmul.bf16.gmra.mxu0 %v967
        %v1093 = vpop.f32.mrf.mxu0
        %v1094 = vadd.f32 %v906, %v1093
        %v1095 = vpop.f32.mrf.mxu0
        %v1096 = vadd.f32 %v906, %v1095
        %1097 = vmatmul.bf16.gmra.mxu0 %v970
        %v1098 = vpop.f32.mrf.mxu0
        %v1099 = vadd.f32 %v906, %v1098
        %v1100 = vpop.f32.mrf.mxu0
        %v1101 = vadd.f32 %v906, %v1100
        %1102 = vmatmul.bf16.gmra.mxu0 %v973
        %v1103 = vpop.f32.mrf.mxu0
        %v1104 = vadd.f32 %v906, %v1103
        %v1105 = vpop.f32.mrf.mxu0
        %v1106 = vadd.f32 %v906, %v1105
        %1107 = vmatmul.bf16.gmra.mxu0 %v976
        %v1108 = vpop.f32.mrf.mxu0
        %v1109 = vadd.f32 %v906, %v1108
        %v1110 = vpop.f32.mrf.mxu0
        %v1111 = vadd.f32 %v906, %v1110
        %1112 = vmatmul.bf16.gmra.mxu0 %v979
        %v1113 = vpop.f32.mrf.mxu0
        %v1114 = vadd.f32 %v906, %v1113
        %v1115 = vpop.f32.mrf.mxu0
        %v1116 = vadd.f32 %v906, %v1115
        %1117 = vmatmul.bf16.gmra.mxu0 %v982
        %v1118 = vpop.f32.mrf.mxu0
        %v1119 = vadd.f32 %v906, %v1118
        %v1120 = vpop.f32.mrf.mxu0
        %v1121 = vadd.f32 %v906, %v1120
        %1122 = vmatmul.bf16.gmra.mxu0 %v985
        %v1123 = vpop.f32.mrf.mxu0
        %v1124 = vadd.f32 %v906, %v1123
        %v1125 = vpop.f32.mrf.mxu0
        %v1126 = vadd.f32 %v906, %v1125
        %1127 = vmatmul.bf16.gmra.mxu0 %v988
        %v1128 = vpop.f32.mrf.mxu0
        %v1129 = vadd.f32 %v906, %v1128
        %v1130 = vpop.f32.mrf.mxu0
        %v1131 = vadd.f32 %v906, %v1130
        %1132 = vmatmul.bf16.gmra.mxu0 %v991
        %v1133 = vpop.f32.mrf.mxu0
        %v1134 = vadd.f32 %v906, %v1133
        %v1135 = vpop.f32.mrf.mxu0
        %v1136 = vadd.f32 %v906, %v1135
        %1137 = vmatmul.bf16.gmra.mxu0 %v994
        %v1138 = vpop.f32.mrf.mxu0
        %v1139 = vadd.f32 %v906, %v1138
        %v1140 = vpop.f32.mrf.mxu0
        %v1141 = vadd.f32 %v906, %v1140
        %1142 = vmatmul.bf16.gmra.mxu0 %v997
        %v1143 = vpop.f32.mrf.mxu0
        %v1144 = vadd.f32 %v906, %v1143
        %v1145 = vpop.f32.mrf.mxu0
        %v1146 = vadd.f32 %v906, %v1145
        %1147 = vmatmul.bf16.gmra.mxu0 %v1000
        %v1148 = vpop.f32.mrf.mxu0
        %v1149 = vadd.f32 %v906, %v1148
        %v1150 = vpop.f32.mrf.mxu0
        %v1151 = vadd.f32 %v906, %v1150
        %1152 = vmatmul.bf16.gmra.mxu0 %v1003
        %v1153 = vpop.f32.mrf.mxu0
        %v1154 = vadd.f32 %v906, %v1153
        %v1155 = vpop.f32.mrf.mxu0
        %v1156 = vadd.f32 %v906, %v1155
        %1157 = vmatmul.bf16.gmra.mxu0 %v1006
        %v1158 = vpop.f32.mrf.mxu0
        %v1159 = vadd.f32 %v906, %v1158
        %v1160 = vpop.f32.mrf.mxu0
        %v1161 = vadd.f32 %v906, %v1160
        %1162 = vmatmul.bf16.gmra.mxu0 %v1009
        %v1163 = vpop.f32.mrf.mxu0
        %v1164 = vadd.f32 %v906, %v1163
        %v1165 = vpop.f32.mrf.mxu0
        %v1166 = vadd.f32 %v906, %v1165
        %1167 = vmatmul.bf16.gmra.mxu0 %v1012
        %v1168 = vpop.f32.mrf.mxu0
        %v1169 = vadd.f32 %v906, %v1168
        %v1170 = vpop.f32.mrf.mxu0
        %v1171 = vadd.f32 %v906, %v1170
        %1172 = vmatmul.bf16.gmra.mxu0 %v1015
        %v1173 = vpop.f32.mrf.mxu0
        %v1174 = vadd.f32 %v906, %v1173
        %v1175 = vpop.f32.mrf.mxu0
        %v1176 = vadd.f32 %v906, %v1175
        %1177 = vmatmul.bf16.gmra.mxu0 %v1018
        %v1178 = vpop.f32.mrf.mxu0
        %v1179 = vadd.f32 %v906, %v1178
        %v1180 = vpop.f32.mrf.mxu0
        %v1181 = vadd.f32 %v906, %v1180
        %1182 = vmatmul.bf16.gmra.mxu0 %v1021
        %v1183 = vpop.f32.mrf.mxu0
        %v1184 = vadd.f32 %v906, %v1183
        %v1185 = vpop.f32.mrf.mxu0
        %v1186 = vadd.f32 %v906, %v1185
        %1187 = vmatmul.bf16.gmra.mxu0 %v1024
        %v1188 = vpop.f32.mrf.mxu0
        %v1189 = vadd.f32 %v906, %v1188
        %v1190 = vpop.f32.mrf.mxu0
        %v1191 = vadd.f32 %v906, %v1190
        %1192 = vmatmul.bf16.gmra.mxu0 %v1027
        %v1193 = vpop.f32.mrf.mxu0
        %v1194 = vadd.f32 %v906, %v1193
        %v1195 = vpop.f32.mrf.mxu0
        %v1196 = vadd.f32 %v906, %v1195
        %1197 = vdwg.mxu0
        %vm1198 = vcmask 23552
        %1199 = vst.msk [vmem:[%s226] sm:$0xff] %vm1198, %v1039
        %1200 = vst.msk [vmem:[%s226 + $0x8] sm:$0xff] %vm1198, %v1041
        %1201 = vst.msk [vmem:[%s226 + $0x10] sm:$0xff] %vm1198, %v1044
        %1202 = vst.msk [vmem:[%s226 + $0x18] sm:$0xff] %vm1198, %v1046
        %1203 = vst.msk [vmem:[%s226 + $0x20] sm:$0xff] %vm1198, %v1049
        %1204 = vst.msk [vmem:[%s226 + $0x28] sm:$0xff] %vm1198, %v1051
        %1205 = vst.msk [vmem:[%s226 + $0x30] sm:$0xff] %vm1198, %v1054
        %1206 = vst.msk [vmem:[%s226 + $0x38] sm:$0xff] %vm1198, %v1056
        %1207 = vst.msk [vmem:[%s226 + $0x40] sm:$0xff] %vm1198, %v1059
        %1208 = vst.msk [vmem:[%s226 + $0x48] sm:$0xff] %vm1198, %v1061
        %1209 = vst.msk [vmem:[%s226 + $0x50] sm:$0xff] %vm1198, %v1064
        %1210 = vst.msk [vmem:[%s226 + $0x58] sm:$0xff] %vm1198, %v1066
        %1211 = vst.msk [vmem:[%s226 + $0x60] sm:$0xff] %vm1198, %v1069
        %1212 = vst.msk [vmem:[%s226 + $0x68] sm:$0xff] %vm1198, %v1071
        %1213 = vst.msk [vmem:[%s226 + $0x70] sm:$0xff] %vm1198, %v1074
        %1214 = vst.msk [vmem:[%s226 + $0x78] sm:$0xff] %vm1198, %v1076
        %1215 = vst.msk [vmem:[%s226 + $0x80] sm:$0xff] %vm1198, %v1079
        %1216 = vst.msk [vmem:[%s226 + $0x88] sm:$0xff] %vm1198, %v1081
        %1217 = vst.msk [vmem:[%s226 + $0x90] sm:$0xff] %vm1198, %v1084
        %1218 = vst.msk [vmem:[%s226 + $0x98] sm:$0xff] %vm1198, %v1086
        %1219 = vst.msk [vmem:[%s226 + $0xa0] sm:$0xff] %vm1198, %v1089
        %1220 = vst.msk [vmem:[%s226 + $0xa8] sm:$0xff] %vm1198, %v1091
        %1221 = vst.msk [vmem:[%s226 + $0xb0] sm:$0xff] %vm1198, %v1094
        %1222 = vst.msk [vmem:[%s226 + $0xb8] sm:$0xff] %vm1198, %v1096
        %1223 = vst.msk [vmem:[%s226 + $0xc0] sm:$0xff] %vm1198, %v1099
        %1224 = vst.msk [vmem:[%s226 + $0xc8] sm:$0xff] %vm1198, %v1101
        %1225 = vst.msk [vmem:[%s226 + $0xd0] sm:$0xff] %vm1198, %v1104
        %1226 = vst.msk [vmem:[%s226 + $0xd8] sm:$0xff] %vm1198, %v1106
        %1227 = vst.msk [vmem:[%s226 + $0xe0] sm:$0xff] %vm1198, %v1109
        %1228 = vst.msk [vmem:[%s226 + $0xe8] sm:$0xff] %vm1198, %v1111
        %1229 = vst.msk [vmem:[%s226 + $0xf0] sm:$0xff] %vm1198, %v1114
        %1230 = vst.msk [vmem:[%s226 + $0xf8] sm:$0xff] %vm1198, %v1116
        %1231 = vst.msk [vmem:[%s226 + $0x100] sm:$0xff] %vm1198, %v1119
        %1232 = vst.msk [vmem:[%s226 + $0x108] sm:$0xff] %vm1198, %v1121
        %1233 = vst.msk [vmem:[%s226 + $0x110] sm:$0xff] %vm1198, %v1124
        %1234 = vst.msk [vmem:[%s226 + $0x118] sm:$0xff] %vm1198, %v1126
        %1235 = vst.msk [vmem:[%s226 + $0x120] sm:$0xff] %vm1198, %v1129
        %1236 = vst.msk [vmem:[%s226 + $0x128] sm:$0xff] %vm1198, %v1131
        %1237 = vst.msk [vmem:[%s226 + $0x130] sm:$0xff] %vm1198, %v1134
        %1238 = vst.msk [vmem:[%s226 + $0x138] sm:$0xff] %vm1198, %v1136
        %1239 = vst.msk [vmem:[%s226 + $0x140] sm:$0xff] %vm1198, %v1139
        %1240 = vst.msk [vmem:[%s226 + $0x148] sm:$0xff] %vm1198, %v1141
        %1241 = vst.msk [vmem:[%s226 + $0x150] sm:$0xff] %vm1198, %v1144
        %1242 = vst.msk [vmem:[%s226 + $0x158] sm:$0xff] %vm1198, %v1146
        %1243 = vst.msk [vmem:[%s226 + $0x160] sm:$0xff] %vm1198, %v1149
        %1244 = vst.msk [vmem:[%s226 + $0x168] sm:$0xff] %vm1198, %v1151
        %1245 = vst.msk [vmem:[%s226 + $0x170] sm:$0xff] %vm1198, %v1154
        %1246 = vst.msk [vmem:[%s226 + $0x178] sm:$0xff] %vm1198, %v1156
        %1247 = vst.msk [vmem:[%s226 + $0x180] sm:$0xff] %vm1198, %v1159
        %1248 = vst.msk [vmem:[%s226 + $0x188] sm:$0xff] %vm1198, %v1161
        %1249 = vst.msk [vmem:[%s226 + $0x190] sm:$0xff] %vm1198, %v1164
        %1250 = vst.msk [vmem:[%s226 + $0x198] sm:$0xff] %vm1198, %v1166
        %1251 = vst.msk [vmem:[%s226 + $0x1a0] sm:$0xff] %vm1198, %v1169
        %1252 = vst.msk [vmem:[%s226 + $0x1a8] sm:$0xff] %vm1198, %v1171
        %1253 = vst.msk [vmem:[%s226 + $0x1b0] sm:$0xff] %vm1198, %v1174
        %1254 = vst.msk [vmem:[%s226 + $0x1b8] sm:$0xff] %vm1198, %v1176
        %1255 = vst.msk [vmem:[%s226 + $0x1c0] sm:$0xff] %vm1198, %v1179
        %1256 = vst.msk [vmem:[%s226 + $0x1c8] sm:$0xff] %vm1198, %v1181
        %1257 = vst.msk [vmem:[%s226 + $0x1d0] sm:$0xff] %vm1198, %v1184
        %1258 = vst.msk [vmem:[%s226 + $0x1d8] sm:$0xff] %vm1198, %v1186
        %1259 = vst.msk [vmem:[%s226 + $0x1e0] sm:$0xff] %vm1198, %v1189
        %1260 = vst.msk [vmem:[%s226 + $0x1e8] sm:$0xff] %vm1198, %v1191
        %1261 = vst.msk [vmem:[%s226 + $0x1f0] sm:$0xff] %vm1198, %v1194
        %1262 = vst.msk [vmem:[%s226 + $0x1f8] sm:$0xff] %vm1198, %v1196
        %s1263 = sand.u32 %s134, 1
        %s1264 = sand.u32 %s134, 1
        %s1265 = smul.addr %s1264, 512
        %s1266 = scalar_lea.vmem [#allocation2], %s1265
        // Predicated region
        $region41: #{tpu_custom_call.1} parent=39 // pred_check
          %p1267 = pneg %p144
        $region42: #{tpu_custom_call.1} parent=39 // pred_check_branch
          %1269 = sbr.rel (%p1267) target = $region44
        $region43: #{tpu_custom_call.1} parent=39 // pred_region
          %s1270 = smul.u32 64, %s16
          %s1271 = ssub.s32 130, %s1270
          %p1272 = scmp.lt.s32.totalorder %s1271, 64
          %s1273 = scalar_select %p1272, %s1271, 64
          %s1274 = smul.u32 8, %s1273
          %p1275 = scmp.ne.s32.totalorder 0, %s1274
          %s1276 = smul.addr %s1270, 8
          %s1277 = scalar_lea.vmem %s5, %s1276
          // Predicated region
          $region45: #{tpu_custom_call.1} parent=43 // pred_check
            %p1278 = pneg %p1275
          $region46: #{tpu_custom_call.1} parent=43 // pred_check_branch
            %1280 = sbr.rel (%p1278) target = $region48
          $region47: #{tpu_custom_call.1} parent=43 // pred_region
            // Predicated region
            $region49: #{tpu_custom_call.1} parent=47 // pred_check
              _
            $region50: #{tpu_custom_call.1} parent=47 // pred_check_branch
              %1282 = sbr.rel (0) target = $region52
            $region51: #{tpu_custom_call.1} parent=47 // pred_region
              // Predicated region
              $region71: #{tpu_custom_call.1} parent=51 // pred_check
                _
              $region72: #{tpu_custom_call.1} parent=51 // pred_check_branch
                %1394 = sbr.rel (0) target = $region74
              $region73: #{tpu_custom_call.1} parent=51 // pred_region
                %s1395 = sshrl.u32 %s1273, 5
                // While loop
                $region75: #{tpu_custom_call.1} parent=73 // loop_pre_header
                  _
                $region76: #{tpu_custom_call.1} parent=73 // loop_header
                  %s1397 = sphi 0, %s1399
                  %p1398 = scmp.ge.s32.totalorder %s1397, %s1395
                  %s1402 = sphi 0, %s1471
                  %s1403 = sphi %s1266, %s1474
                  %s1404 = sphi %s1277, %s1475
                $region77: #{tpu_custom_call.1} parent=73 // loop_header_branch
                  %1401 = sbr.rel (%p1398) target = $region81
                $region78: #{tpu_custom_call.1} parent=73 // loop_body
                  %v1405 = vld [vmem:[%s1403] sm:$0xff]
                  %1406 = vst [vmem:[%s1404] sm:$0xff] %v1405
                  %v1407 = vld [vmem:[%s1403 + $0x8] sm:$0xff]
                  %1408 = vst [vmem:[%s1404 + $0x8] sm:$0xff] %v1407
                  %v1409 = vld [vmem:[%s1403 + $0x10] sm:$0xff]
                  %1410 = vst [vmem:[%s1404 + $0x10] sm:$0xff] %v1409
                  %v1411 = vld [vmem:[%s1403 + $0x18] sm:$0xff]
                  %1412 = vst [vmem:[%s1404 + $0x18] sm:$0xff] %v1411
                  %v1413 = vld [vmem:[%s1403 + $0x20] sm:$0xff]
                  %1414 = vst [vmem:[%s1404 + $0x20] sm:$0xff] %v1413
                  %v1415 = vld [vmem:[%s1403 + $0x28] sm:$0xff]
                  %1416 = vst [vmem:[%s1404 + $0x28] sm:$0xff] %v1415
                  %v1417 = vld [vmem:[%s1403 + $0x30] sm:$0xff]
                  %1418 = vst [vmem:[%s1404 + $0x30] sm:$0xff] %v1417
                  %v1419 = vld [vmem:[%s1403 + $0x38] sm:$0xff]
                  %1420 = vst [vmem:[%s1404 + $0x38] sm:$0xff] %v1419
                  %v1421 = vld [vmem:[%s1403 + $0x40] sm:$0xff]
                  %1422 = vst [vmem:[%s1404 + $0x40] sm:$0xff] %v1421
                  %v1423 = vld [vmem:[%s1403 + $0x48] sm:$0xff]
                  %1424 = vst [vmem:[%s1404 + $0x48] sm:$0xff] %v1423
                  %v1425 = vld [vmem:[%s1403 + $0x50] sm:$0xff]
                  %1426 = vst [vmem:[%s1404 + $0x50] sm:$0xff] %v1425
                  %v1427 = vld [vmem:[%s1403 + $0x58] sm:$0xff]
                  %1428 = vst [vmem:[%s1404 + $0x58] sm:$0xff] %v1427
                  %v1429 = vld [vmem:[%s1403 + $0x60] sm:$0xff]
                  %1430 = vst [vmem:[%s1404 + $0x60] sm:$0xff] %v1429
                  %v1431 = vld [vmem:[%s1403 + $0x68] sm:$0xff]
                  %1432 = vst [vmem:[%s1404 + $0x68] sm:$0xff] %v1431
                  %v1433 = vld [vmem:[%s1403 + $0x70] sm:$0xff]
                  %1434 = vst [vmem:[%s1404 + $0x70] sm:$0xff] %v1433
                  %v1435 = vld [vmem:[%s1403 + $0x78] sm:$0xff]
                  %1436 = vst [vmem:[%s1404 + $0x78] sm:$0xff] %v1435
                  %v1437 = vld [vmem:[%s1403 + $0x80] sm:$0xff]
                  %1438 = vst [vmem:[%s1404 + $0x80] sm:$0xff] %v1437
                  %v1439 = vld [vmem:[%s1403 + $0x88] sm:$0xff]
                  %1440 = vst [vmem:[%s1404 + $0x88] sm:$0xff] %v1439
                  %v1441 = vld [vmem:[%s1403 + $0x90] sm:$0xff]
                  %1442 = vst [vmem:[%s1404 + $0x90] sm:$0xff] %v1441
                  %v1443 = vld [vmem:[%s1403 + $0x98] sm:$0xff]
                  %1444 = vst [vmem:[%s1404 + $0x98] sm:$0xff] %v1443
                  %v1445 = vld [vmem:[%s1403 + $0xa0] sm:$0xff]
                  %1446 = vst [vmem:[%s1404 + $0xa0] sm:$0xff] %v1445
                  %v1447 = vld [vmem:[%s1403 + $0xa8] sm:$0xff]
                  %1448 = vst [vmem:[%s1404 + $0xa8] sm:$0xff] %v1447
                  %v1449 = vld [vmem:[%s1403 + $0xb0] sm:$0xff]
                  %1450 = vst [vmem:[%s1404 + $0xb0] sm:$0xff] %v1449
                  %v1451 = vld [vmem:[%s1403 + $0xb8] sm:$0xff]
                  %1452 = vst [vmem:[%s1404 + $0xb8] sm:$0xff] %v1451
                  %v1453 = vld [vmem:[%s1403 + $0xc0] sm:$0xff]
                  %1454 = vst [vmem:[%s1404 + $0xc0] sm:$0xff] %v1453
                  %v1455 = vld [vmem:[%s1403 + $0xc8] sm:$0xff]
                  %1456 = vst [vmem:[%s1404 + $0xc8] sm:$0xff] %v1455
                  %v1457 = vld [vmem:[%s1403 + $0xd0] sm:$0xff]
                  %1458 = vst [vmem:[%s1404 + $0xd0] sm:$0xff] %v1457
                  %v1459 = vld [vmem:[%s1403 + $0xd8] sm:$0xff]
                  %1460 = vst [vmem:[%s1404 + $0xd8] sm:$0xff] %v1459
                  %v1461 = vld [vmem:[%s1403 + $0xe0] sm:$0xff]
                  %1462 = vst [vmem:[%s1404 + $0xe0] sm:$0xff] %v1461
                  %v1463 = vld [vmem:[%s1403 + $0xe8] sm:$0xff]
                  %1464 = vst [vmem:[%s1404 + $0xe8] sm:$0xff] %v1463
                  %v1465 = vld [vmem:[%s1403 + $0xf0] sm:$0xff]
                  %1466 = vst [vmem:[%s1404 + $0xf0] sm:$0xff] %v1465
                  %v1467 = vld [vmem:[%s1403 + $0xf8] sm:$0xff]
                  %1468 = vst [vmem:[%s1404 + $0xf8] sm:$0xff] %v1467
                  %s1469 = sadd.s32 1, %s1402
                  %p1470 = scmp.ge.s32.totalorder %s1469, %s1395
                  %s1471 = scalar_select %p1470, 0, %s1469
                  %s1472 = smul.u32 %s1471, 256
                  %s1473 = smul.u32 %s1471, 256
                  %s1474 = scalar_lea.vmem %s1266, %s1472 [#allocation2]
                  %s1475 = scalar_lea.vmem %s1277, %s1473
                $region79: #{tpu_custom_call.1} parent=73 // loop_footer
                  %s1399 = sadd.s32 %s1397, 1
                $region80: #{tpu_custom_call.1} parent=73 // loop_footer_branch
                  %1396 = sbr.rel target = $region76
                $region81: #{tpu_custom_call.1} parent=73 // loop_exit
                  _
                %s1476 = sshrl.u32 %s1273, 5
                %s1477 = sand.u32 %s1273, 31
                %s1478 = smul.u32 %s1476, 32
                %s1479 = smul.u32 8, %s1478
                %s1480 = scalar_lea.vmem %s1266, %s1479 [#allocation2]
                %s1481 = smul.u32 8, %s1478
                %s1482 = scalar_lea.vmem %s1277, %s1481
                // While loop
                $region82: #{tpu_custom_call.1} parent=73 // loop_pre_header
                  _
                $region83: #{tpu_custom_call.1} parent=73 // loop_header
                  %s1484 = sphi 0, %s1486
                  %p1485 = scmp.ge.s32.totalorder %s1484, %s1477
                  %s1489 = sphi 0, %s1496
                  %s1490 = sphi %s1480, %s1499
                  %s1491 = sphi %s1482, %s1500
                $region84: #{tpu_custom_call.1} parent=73 // loop_header_branch
                  %1488 = sbr.rel (%p1485) target = $region88
                $region85: #{tpu_custom_call.1} parent=73 // loop_body
                  %v1492 = vld [vmem:[%s1490] sm:$0xff]
                  %1493 = vst [vmem:[%s1491] sm:$0xff] %v1492
                  %s1494 = sadd.s32 1, %s1489
                  %p1495 = scmp.ge.s32.totalorder %s1494, %s1477
                  %s1496 = scalar_select %p1495, 0, %s1494
                  %s1497 = smul.u32 %s1496, 8
                  %s1498 = smul.u32 %s1496, 8
                  %s1499 = scalar_lea.vmem %s1480, %s1497 [#allocation2]
                  %s1500 = scalar_lea.vmem %s1482, %s1498
                $region86: #{tpu_custom_call.1} parent=73 // loop_footer
                  %s1486 = sadd.s32 %s1484, 1
                $region87: #{tpu_custom_call.1} parent=73 // loop_footer_branch
                  %1483 = sbr.rel target = $region83
                $region88: #{tpu_custom_call.1} parent=73 // loop_exit
                  _
              $region74: #{tpu_custom_call.1} parent=51 // pred_fallthru
                _
              // Predicated region
              $region89: #{tpu_custom_call.1} parent=51 // pred_check
                _
              $region90: #{tpu_custom_call.1} parent=51 // pred_check_branch
                %1502 = sbr.rel target = $region92
              $region91: #{tpu_custom_call.1} parent=51 // pred_region
                _
              $region92: #{tpu_custom_call.1} parent=51 // pred_fallthru
                _
            $region52: #{tpu_custom_call.1} parent=47 // pred_fallthru
              _
            // Predicated region
            $region53: #{tpu_custom_call.1} parent=47 // pred_check
              _
            $region54: #{tpu_custom_call.1} parent=47 // pred_check_branch
              %1284 = sbr.rel target = $region56
            $region55: #{tpu_custom_call.1} parent=47 // pred_region
              %s1286 = ssub.s32 256, 1
              %s1287 = sshrl.u32 %s1273, 5
              // While loop
              $region57: #{tpu_custom_call.1} parent=55 // loop_pre_header
                _
              $region58: #{tpu_custom_call.1} parent=55 // loop_header
                %s1289 = sphi 0, %s1291
                %p1290 = scmp.ge.s32.totalorder %s1289, %s1287
                %s1294 = sphi 0, %s1363
                %s1295 = sphi %s1266, %s1366
                %s1296 = sphi %s1277, %s1367
              $region59: #{tpu_custom_call.1} parent=55 // loop_header_branch
                %1293 = sbr.rel (%p1290) target = $region63
              $region60: #{tpu_custom_call.1} parent=55 // loop_body
                %v1297 = vld [vmem:[%s1295] sm:%s1286]
                %1298 = vst [vmem:[%s1296] sm:%s1286] %v1297
                %v1299 = vld [vmem:[%s1295 + $0x8] sm:%s1286]
                %1300 = vst [vmem:[%s1296 + $0x8] sm:%s1286] %v1299
                %v1301 = vld [vmem:[%s1295 + $0x10] sm:%s1286]
                %1302 = vst [vmem:[%s1296 + $0x10] sm:%s1286] %v1301
                %v1303 = vld [vmem:[%s1295 + $0x18] sm:%s1286]
                %1304 = vst [vmem:[%s1296 + $0x18] sm:%s1286] %v1303
                %v1305 = vld [vmem:[%s1295 + $0x20] sm:%s1286]
                %1306 = vst [vmem:[%s1296 + $0x20] sm:%s1286] %v1305
                %v1307 = vld [vmem:[%s1295 + $0x28] sm:%s1286]
                %1308 = vst [vmem:[%s1296 + $0x28] sm:%s1286] %v1307
                %v1309 = vld [vmem:[%s1295 + $0x30] sm:%s1286]
                %1310 = vst [vmem:[%s1296 + $0x30] sm:%s1286] %v1309
                %v1311 = vld [vmem:[%s1295 + $0x38] sm:%s1286]
                %1312 = vst [vmem:[%s1296 + $0x38] sm:%s1286] %v1311
                %v1313 = vld [vmem:[%s1295 + $0x40] sm:%s1286]
                %1314 = vst [vmem:[%s1296 + $0x40] sm:%s1286] %v1313
                %v1315 = vld [vmem:[%s1295 + $0x48] sm:%s1286]
                %1316 = vst [vmem:[%s1296 + $0x48] sm:%s1286] %v1315
                %v1317 = vld [vmem:[%s1295 + $0x50] sm:%s1286]
                %1318 = vst [vmem:[%s1296 + $0x50] sm:%s1286] %v1317
                %v1319 = vld [vmem:[%s1295 + $0x58] sm:%s1286]
                %1320 = vst [vmem:[%s1296 + $0x58] sm:%s1286] %v1319
                %v1321 = vld [vmem:[%s1295 + $0x60] sm:%s1286]
                %1322 = vst [vmem:[%s1296 + $0x60] sm:%s1286] %v1321
                %v1323 = vld [vmem:[%s1295 + $0x68] sm:%s1286]
                %1324 = vst [vmem:[%s1296 + $0x68] sm:%s1286] %v1323
                %v1325 = vld [vmem:[%s1295 + $0x70] sm:%s1286]
                %1326 = vst [vmem:[%s1296 + $0x70] sm:%s1286] %v1325
                %v1327 = vld [vmem:[%s1295 + $0x78] sm:%s1286]
                %1328 = vst [vmem:[%s1296 + $0x78] sm:%s1286] %v1327
                %v1329 = vld [vmem:[%s1295 + $0x80] sm:%s1286]
                %1330 = vst [vmem:[%s1296 + $0x80] sm:%s1286] %v1329
                %v1331 = vld [vmem:[%s1295 + $0x88] sm:%s1286]
                %1332 = vst [vmem:[%s1296 + $0x88] sm:%s1286] %v1331
                %v1333 = vld [vmem:[%s1295 + $0x90] sm:%s1286]
                %1334 = vst [vmem:[%s1296 + $0x90] sm:%s1286] %v1333
                %v1335 = vld [vmem:[%s1295 + $0x98] sm:%s1286]
                %1336 = vst [vmem:[%s1296 + $0x98] sm:%s1286] %v1335
                %v1337 = vld [vmem:[%s1295 + $0xa0] sm:%s1286]
                %1338 = vst [vmem:[%s1296 + $0xa0] sm:%s1286] %v1337
                %v1339 = vld [vmem:[%s1295 + $0xa8] sm:%s1286]
                %1340 = vst [vmem:[%s1296 + $0xa8] sm:%s1286] %v1339
                %v1341 = vld [vmem:[%s1295 + $0xb0] sm:%s1286]
                %1342 = vst [vmem:[%s1296 + $0xb0] sm:%s1286] %v1341
                %v1343 = vld [vmem:[%s1295 + $0xb8] sm:%s1286]
                %1344 = vst [vmem:[%s1296 + $0xb8] sm:%s1286] %v1343
                %v1345 = vld [vmem:[%s1295 + $0xc0] sm:%s1286]
                %1346 = vst [vmem:[%s1296 + $0xc0] sm:%s1286] %v1345
                %v1347 = vld [vmem:[%s1295 + $0xc8] sm:%s1286]
                %1348 = vst [vmem:[%s1296 + $0xc8] sm:%s1286] %v1347
                %v1349 = vld [vmem:[%s1295 + $0xd0] sm:%s1286]
                %1350 = vst [vmem:[%s1296 + $0xd0] sm:%s1286] %v1349
                %v1351 = vld [vmem:[%s1295 + $0xd8] sm:%s1286]
                %1352 = vst [vmem:[%s1296 + $0xd8] sm:%s1286] %v1351
                %v1353 = vld [vmem:[%s1295 + $0xe0] sm:%s1286]
                %1354 = vst [vmem:[%s1296 + $0xe0] sm:%s1286] %v1353
                %v1355 = vld [vmem:[%s1295 + $0xe8] sm:%s1286]
                %1356 = vst [vmem:[%s1296 + $0xe8] sm:%s1286] %v1355
                %v1357 = vld [vmem:[%s1295 + $0xf0] sm:%s1286]
                %1358 = vst [vmem:[%s1296 + $0xf0] sm:%s1286] %v1357
                %v1359 = vld [vmem:[%s1295 + $0xf8] sm:%s1286]
                %1360 = vst [vmem:[%s1296 + $0xf8] sm:%s1286] %v1359
                %s1361 = sadd.s32 1, %s1294
                %p1362 = scmp.ge.s32.totalorder %s1361, %s1287
                %s1363 = scalar_select %p1362, 0, %s1361
                %s1364 = smul.u32 %s1363, 256
                %s1365 = smul.u32 %s1363, 256
                %s1366 = scalar_lea.vmem %s1266, %s1364 [#allocation2]
                %s1367 = scalar_lea.vmem %s1277, %s1365
              $region61: #{tpu_custom_call.1} parent=55 // loop_footer
                %s1291 = sadd.s32 %s1289, 1
              $region62: #{tpu_custom_call.1} parent=55 // loop_footer_branch
                %1288 = sbr.rel target = $region58
              $region63: #{tpu_custom_call.1} parent=55 // loop_exit
                _
              %s1368 = sshrl.u32 %s1273, 5
              %s1369 = sand.u32 %s1273, 31
              %s1370 = smul.u32 %s1368, 32
              %s1371 = smul.u32 8, %s1370
              %s1372 = scalar_lea.vmem %s1266, %s1371 [#allocation2]
              %s1373 = smul.u32 8, %s1370
              %s1374 = scalar_lea.vmem %s1277, %s1373
              // While loop
              $region64: #{tpu_custom_call.1} parent=55 // loop_pre_header
                _
              $region65: #{tpu_custom_call.1} parent=55 // loop_header
                %s1376 = sphi 0, %s1378
                %p1377 = scmp.ge.s32.totalorder %s1376, %s1369
                %s1381 = sphi 0, %s1388
                %s1382 = sphi %s1372, %s1391
                %s1383 = sphi %s1374, %s1392
              $region66: #{tpu_custom_call.1} parent=55 // loop_header_branch
                %1380 = sbr.rel (%p1377) target = $region70
              $region67: #{tpu_custom_call.1} parent=55 // loop_body
                %v1384 = vld [vmem:[%s1382] sm:%s1286]
                %1385 = vst [vmem:[%s1383] sm:%s1286] %v1384
                %s1386 = sadd.s32 1, %s1381
                %p1387 = scmp.ge.s32.totalorder %s1386, %s1369
                %s1388 = scalar_select %p1387, 0, %s1386
                %s1389 = smul.u32 %s1388, 8
                %s1390 = smul.u32 %s1388, 8
                %s1391 = scalar_lea.vmem %s1372, %s1389 [#allocation2]
                %s1392 = scalar_lea.vmem %s1374, %s1390
              $region68: #{tpu_custom_call.1} parent=55 // loop_footer
                %s1378 = sadd.s32 %s1376, 1
              $region69: #{tpu_custom_call.1} parent=55 // loop_footer_branch
                %1375 = sbr.rel target = $region65
              $region70: #{tpu_custom_call.1} parent=55 // loop_exit
                _
            $region56: #{tpu_custom_call.1} parent=47 // pred_fallthru
              _
          $region48: #{tpu_custom_call.1} parent=43 // pred_fallthru
            _
          %1503 = vnop
        $region44: #{tpu_custom_call.1} parent=39 // pred_fallthru
          _
      $region40: #{tpu_custom_call.1} parent=5 // pred_fallthru
        _
      %p1504 = scmp.le.s32.totalorder 2, %s11
      // Predicated region
      $region93: #{tpu_custom_call.1} parent=5 // pred_check
        %p1505 = pneg %p1504
      $region94: #{tpu_custom_call.1} parent=5 // pred_check_branch
        %1507 = sbr.rel (%p1505) target = $region96
      $region95: #{tpu_custom_call.1} parent=5 // pred_region
        %s1508 = ssub.s32 %s11, 2
        // Predicated region
        $region97: #{tpu_custom_call.1} parent=95 // pred_check
          %p1509 = pneg %p150
        $region98: #{tpu_custom_call.1} parent=95 // pred_check_branch
          %1511 = sbr.rel (%p1509) target = $region100
        $region99: #{tpu_custom_call.1} parent=95 // pred_region
          %s1512 = sand.u32 %s135, 1
          %s1513 = sand.u32 %s135, 1
          %s1514 = smul.addr %s1513, 512
          %s1515 = scalar_lea.vmem [#allocation2], %s1514
        $region100: #{tpu_custom_call.1} parent=95 // pred_fallthru
          _
      $region96: #{tpu_custom_call.1} parent=5 // pred_fallthru
        _
    $region6: #{tpu_custom_call.1} parent=1 // loop_footer
      %s15 = sadd.s32 1, %s11
    $region7: #{tpu_custom_call.1} parent=1 // loop_footer_branch
      %10 = sbr.rel target = $region3
    $region8: #{tpu_custom_call.1} parent=1 // loop_exit
      _

</llo_original>
